<compile_context>
chip_gen: v7x
topology: tpu7x:2x2x1
jax: 0.10.0
libtpu: 0.0.40
codegen_flags: <defaults>
</compile_context>

<pallas_src>
import functools
import math

import jax
import jax.numpy as jnp
from jax.experimental import pallas as pl
from jax.experimental.pallas import tpu as pltpu


def _round_up(x, m):
    return ((x + m - 1) // m) * m


# ----------------------------------- kernel -----------------------------------

def _resblock_kernel(x_ref, w1_ref, b1_ref, w2_ref, b2_ref, *rest, has_idconv):
    """One batch element of the fused ResBlock1d (stride=1), NCL layout.

    x_ref  : (Ci, L)        channels on sublanes, sequence on lanes, f32
    w1_ref : (3, Co, Ci)    conv1 taps [t-1, t, t+1], bf16
    w2_ref : (3, Co, Co)    conv2 taps, bf16
    wid_ref: (Co, Ci)       1x1 skip conv (only when has_idconv), bf16
    b*_ref : (Co, 1)        f32 (b2 already has the skip bias folded in)
    o_ref  : (Co, L)        f32
    """
    if has_idconv:
        wid_ref, o_ref = rest
    else:
        (o_ref,) = rest

    x = x_ref[...]                                     # (Ci, L) f32
    seq_len = x.shape[-1]
    col = jax.lax.broadcasted_iota(jnp.int32, (1, seq_len), 1)
    is_first = col == 0
    is_last = col == (seq_len - 1)
    mm_dtype = w1_ref.dtype                            # bf16 matmul operands

    def taps(v):
        # v[t-1] / v[t+1] along the lane axis with zero padding at the boundaries
        # (XLU lane roll + boundary masks; roll slot is separate from the VPU).
        vm = jnp.where(is_first, 0.0, pltpu.roll(v, shift=1, axis=1))
        vp = jnp.where(is_last, 0.0, pltpu.roll(v, shift=seq_len - 1, axis=1))
        return vm, vp

    def conv3(v, w_ref, b_ref):
        vm, vp = taps(v)
        vb, vmb, vpb = (t.astype(mm_dtype) for t in (v, vm, vp))
        y = (jnp.dot(w_ref[0], vmb, preferred_element_type=jnp.float32)
             + jnp.dot(w_ref[1], vb, preferred_element_type=jnp.float32)
             + jnp.dot(w_ref[2], vpb, preferred_element_type=jnp.float32))
        return y + b_ref[...]                          # (Co,1) broadcast over lanes

    h = jnp.maximum(conv3(x, w1_ref, b1_ref), 0.0)     # conv1 + ReLU
    y = conv3(h, w2_ref, b2_ref)                       # conv2 (skip bias folded in)

    if has_idconv:
        skip = jnp.dot(wid_ref[...], x.astype(mm_dtype),
                       preferred_element_type=jnp.float32)
    else:
        skip = x                                       # identity skip: no matmul at all

    o_ref[...] = jnp.maximum(y + skip, 0.0).astype(o_ref.dtype)


# -------------------------------- wrapper / packing --------------------------------

def pack_resblock_params(w1, b1, w2, b2, wid=None, bid=None, *,
                         dtype=jnp.bfloat16, pad=8):
    """Pack PyTorch-layout Conv1d weights once (reuse across forward calls).

    w1: (nf, ni, 3), b1: (nf,)   |  w2: (nf, nf, 3), b2: (nf,)
    wid: (nf, ni, 1), bid: (nf,) |  wid=None -> identity skip (requires ni == nf).
    """
    nf, ni, ks = w1.shape
    assert ks == 3, "only ks=3 (module default) is implemented"
    ci, co = _round_up(ni, pad), _round_up(nf, pad)
    has_idconv = wid is not None
    if not has_idconv:
        assert ni == nf, "identity skip requires ni == nf"

    def pack_w(w, cin_p, cout_p):          # (out, in, k) -> (k, out_p, in_p)
        wp = jnp.zeros((w.shape[2], cout_p, cin_p), jnp.float32)
        wp = wp.at[:, :w.shape[0], :w.shape[1]].set(
            jnp.transpose(w, (2, 0, 1)).astype(jnp.float32))
        return wp.astype(dtype)

    def pack_b(b, cout_p):                 # (out,) -> (out_p, 1) f32
        return jnp.zeros((cout_p, 1), jnp.float32).at[:b.shape[0], 0].set(
            b.astype(jnp.float32))

    b2_eff = b2 + bid if has_idconv else b2    # fold skip bias into conv2 bias
    params = dict(
        ni=ni, nf=nf, ci_pad=ci, co_pad=co, has_idconv=has_idconv,
        w1=pack_w(w1, ci, co), b1=pack_b(b1, co),
        w2=pack_w(w2, co, co), b2=pack_b(b2_eff, co),
    )
    if has_idconv:
        widp = jnp.zeros((co, ci), jnp.float32).at[:nf, :ni].set(
            wid[:, :, 0].astype(jnp.float32))
        params["wid"] = widp.astype(dtype)
    return params


def _vmem_limit_bytes(ci, co, seq_len):
    """Size the scoped-VMEM budget from the real tiles, clamped to physical VMEM."""
    f32, bf16 = 4, 2
    w_bytes = bf16 * (3 * co * ci + 3 * co * co + co * ci) + f32 * 2 * co
    io_bytes = f32 * 2 * seq_len * (ci + co)          # double-buffered x / out tiles
    tmp_bytes = f32 * 10 * seq_len * max(ci, co)      # taps, casts, h, y, skip
    need = 2 * w_bytes + io_bytes + tmp_bytes
    try:
        phys = int(getattr(pltpu.get_tpu_info(), "vmem_capacity_bytes", 64 * 2**20))
    except Exception:
        phys = 64 * 2**20                             # v7x-safe fallback
    return int(min(3 * phys // 4, max(2 * need, 16 * 2**20)))


def res_block_1d(x, params, *, stride=1):
    """Fused ResBlock1d forward.  x: (B, ni, L) f32 -> (B, nf, L) f32."""
    if stride != 1:
        # TODO(synk): strided conv2 + AvgPool1d(stride, ceil_mode=True) skip path.
        raise NotImplementedError("only stride=1 (module default) is implemented")

    batch, ni, seq_len = x.shape
    assert ni == params["ni"], (ni, params["ni"])
    ci, co, nf = params["ci_pad"], params["co_pad"], params["nf"]
    has_idconv = params["has_idconv"]

    xp = x.astype(jnp.float32)
    if ci != ni:                                      # tiny sublane pad only if misaligned
        xp = jnp.pad(xp, ((0, 0), (0, ci - ni), (0, 0)))

    ins = [xp, params["w1"], params["b1"], params["w2"], params["b2"]]
    in_specs = [
        pl.BlockSpec((None, ci, seq_len), lambda b: (b, 0, 0)),   # x: one sequence/step
        pl.BlockSpec((3, co, ci), lambda b: (0, 0, 0)),           # conv1 W (resident)
        pl.BlockSpec((co, 1), lambda b: (0, 0)),                  # conv1 bias
        pl.BlockSpec((3, co, co), lambda b: (0, 0, 0)),           # conv2 W (resident)
        pl.BlockSpec((co, 1), lambda b: (0, 0)),                  # conv2 (+skip) bias
    ]
    if has_idconv:
        ins.append(params["wid"])
        in_specs.append(pl.BlockSpec((co, ci), lambda b: (0, 0)))  # 1x1 skip W

    kernel = functools.partial(_resblock_kernel, has_idconv=has_idconv)

    out = pl.pallas_call(
        kernel,
        out_shape=jax.ShapeDtypeStruct((batch, co, seq_len), jnp.float32),
        grid_spec=pltpu.PrefetchScalarGridSpec(
            num_scalar_prefetch=0,
            grid=(batch,),
            in_specs=in_specs,
            out_specs=pl.BlockSpec((None, co, seq_len), lambda b: (b, 0, 0)),
        ),
        compiler_params=pltpu.CompilerParams(
            dimension_semantics=("parallel",),        # batch steps -> both v7x cores
            vmem_limit_bytes=_vmem_limit_bytes(ci, co, seq_len),
        ),
    )(*ins)

    return out if co == nf else out[:, :nf, :]


# ------------------------- pure-JAX reference & init -------------------------

def _conv1d_ref(x, w, b, stride=1, pad=0):
    y = jax.lax.conv_general_dilated(
        x, w, window_strides=(stride,), padding=[(pad, pad)],
        dimension_numbers=("NCH", "OIH", "NCH"))
    return y + b[None, :, None]


def _res_block_ref(x, w1, b1, w2, b2, wid=None, bid=None):
    h = jnp.maximum(_conv1d_ref(x, w1, b1, pad=1), 0.0)
    y = _conv1d_ref(h, w2, b2, pad=1)
    skip = x if wid is None else _conv1d_ref(x, wid, bid, pad=0)
    return jnp.maximum(y + skip, 0.0)


def _init_params(key, ni, nf, ks=3):
    """Deterministic init mimicking PyTorch Conv1d defaults (Kaiming-uniform)."""
    keys = jax.random.split(key, 6)
    b1v = 1.0 / math.sqrt(ni * ks)
    b2v = 1.0 / math.sqrt(nf * ks)
    biv = 1.0 / math.sqrt(ni * 1)
    w1 = jax.random.uniform(keys[0], (nf, ni, ks), jnp.float32, -b1v, b1v)
    b1 = jax.random.uniform(keys[1], (nf,), jnp.float32, -b1v, b1v)
    w2 = jax.random.uniform(keys[2], (nf, nf, ks), jnp.float32, -b2v, b2v)
    b2 = jax.random.uniform(keys[3], (nf,), jnp.float32, -b2v, b2v)
    wid = jax.random.uniform(keys[4], (nf, ni, 1), jnp.float32, -biv, biv)
    bid = jax.random.uniform(keys[5], (nf,), jnp.float32, -biv, biv)
    return w1, b1, w2, b2, wid, bid


if __name__ == "__main__":
    key = jax.random.PRNGKey(0)
    k_x, k_p, k_p2 = jax.random.split(key, 3)

    # bf16 matmul operands (f32 accumulation) -> compare against the f32 reference with
    # relaxed tolerances, as flagged in the perf review.
    ATOL = RTOL = 3e-2

    # Case 1: ResBlock1d(ni=4, nf=8, stride=1, ks=3, act=ReLU, norm=None) — 1x1 idconv skip.
    B, ni, nf, L = 2, 4, 8, 16
    x = jax.random.normal(k_x, (B, ni, L), dtype=jnp.float32)
    w1, b1, w2, b2, wid, bid = _init_params(k_p, ni, nf)
    params = pack_resblock_params(w1, b1, w2, b2, wid, bid)
    out = jax.block_until_ready(res_block_1d(x, params, stride=1))
    ref = _res_block_ref(x, w1, b1, w2, b2, wid, bid)
    assert out.shape == (B, nf, L), out.shape
    assert jnp.allclose(out, ref, atol=ATOL, rtol=RTOL), float(
        jnp.max(jnp.abs(out - ref)))

    # Case 2: ni == nf -> identity skip variant (no 1x1 matmul, no wid/bid inputs).
    ni2 = nf2 = 8
    x2 = jax.random.normal(k_x, (B, ni2, L), dtype=jnp.float32)
    w1b, b1b, w2b, b2b, _, _ = _init_params(k_p2, ni2, nf2)
    params2 = pack_resblock_params(w1b, b1b, w2b, b2b)          # wid=None
    out2 = jax.block_until_ready(res_block_1d(x2, params2, stride=1))
    ref2 = _res_block_ref(x2, w1b, b1b, w2b, b2b)
    assert out2.shape == (B, nf2, L), out2.shape
    assert jnp.allclose(out2, ref2, atol=ATOL, rtol=RTOL), float(
        jnp.max(jnp.abs(out2 - ref2)))

    print("KERNEL_OK")
</pallas_src>

<mosaic_0001>
module attributes {stable_mosaic.version = 11 : i64} {
  func.func @_resblock_kernel(%arg0: i32, %arg1: memref<1x8x16xf32, #tpu.memory_space<vmem>>, %arg2: memref<3x8x8xbf16, #tpu.memory_space<vmem>>, %arg3: memref<8x1xf32, #tpu.memory_space<vmem>>, %arg4: memref<3x8x8xbf16, #tpu.memory_space<vmem>>, %arg5: memref<8x1xf32, #tpu.memory_space<vmem>>, %arg6: memref<8x8xbf16, #tpu.memory_space<vmem>>, %arg7: memref<1x8x16xf32, #tpu.memory_space<vmem>>) attributes {dimension_semantics = [#tpu.dimension_semantics<parallel>], iteration_bounds = array<i64: 2>, scalar_prefetch = 0 : i64, scratch_operands = 0 : i64, tpu.core_type = #tpu.core_type<tc>, window_params = [{transform_indices = @transform_0, window_bounds = array<i64: 1, 8, 16>}, {pipeline_mode = #tpu.pipeline_mode<synchronous>, transform_indices = @transform_1, window_bounds = array<i64: 3, 8, 8>}, {pipeline_mode = #tpu.pipeline_mode<synchronous>, transform_indices = @transform_2, window_bounds = array<i64: 8, 1>}, {pipeline_mode = #tpu.pipeline_mode<synchronous>, transform_indices = @transform_3, window_bounds = array<i64: 3, 8, 8>}, {pipeline_mode = #tpu.pipeline_mode<synchronous>, transform_indices = @transform_4, window_bounds = array<i64: 8, 1>}, {pipeline_mode = #tpu.pipeline_mode<synchronous>, transform_indices = @transform_5, window_bounds = array<i64: 8, 8>}, {transform_indices = @transform_6, window_bounds = array<i64: 1, 8, 16>}]} {
    %c0 = arith.constant 0 : index
    %c0_0 = arith.constant 0 : index
    %c0_1 = arith.constant 0 : index
    %0 = vector.load %arg1[%c0, %c0_0, %c0_1] : memref<1x8x16xf32, #tpu.memory_space<vmem>>, vector<1x8x16xf32>
    %1 = vector.shape_cast %0 : vector<1x8x16xf32> to vector<8x16xf32>
    %2 = tpu.iota {dimensions = array<i32: 1>} : vector<1x16xi32>
    %c0_i32 = arith.constant 0 : i32
    %3 = vector.broadcast %c0_i32 : i32 to vector<1x16xi32>
    %4 = arith.cmpi eq, %2, %3 : vector<1x16xi32>
    %c15_i32 = arith.constant 15 : i32
    %5 = vector.broadcast %c15_i32 : i32 to vector<1x16xi32>
    %6 = arith.cmpi eq, %2, %5 : vector<1x16xi32>
    %c1_i32 = arith.constant 1 : i32
    %7 = tpu.dynamic_rotate %1 by %c1_i32 dim 1 : vector<8x16xf32>, i32 -> vector<8x16xf32>
    %cst = arith.constant 0.000000e+00 : f32
    %8 = vector.shape_cast %4 : vector<1x16xi1> to vector<1x16xi1>
    %9 = vector.broadcast %8 : vector<1x16xi1> to vector<8x16xi1>
    %10 = vector.broadcast %cst : f32 to vector<8x16xf32>
    %11 = arith.select %9, %10, %7 : vector<8x16xi1>, vector<8x16xf32>
    %c15_i32_2 = arith.constant 15 : i32
    %12 = tpu.dynamic_rotate %1 by %c15_i32_2 dim 1 : vector<8x16xf32>, i32 -> vector<8x16xf32>
    %cst_3 = arith.constant 0.000000e+00 : f32
    %13 = vector.shape_cast %6 : vector<1x16xi1> to vector<1x16xi1>
    %14 = vector.broadcast %13 : vector<1x16xi1> to vector<8x16xi1>
    %15 = vector.broadcast %cst_3 : f32 to vector<8x16xf32>
    %16 = arith.select %14, %15, %12 : vector<8x16xi1>, vector<8x16xf32>
    %17 = arith.truncf %1 : vector<8x16xf32> to vector<8x16xbf16>
    %18 = arith.truncf %11 : vector<8x16xf32> to vector<8x16xbf16>
    %19 = arith.truncf %16 : vector<8x16xf32> to vector<8x16xbf16>
    %c0_4 = arith.constant 0 : index
    %c0_5 = arith.constant 0 : index
    %c0_6 = arith.constant 0 : index
    %20 = vector.load %arg2[%c0_4, %c0_5, %c0_6] : memref<3x8x8xbf16, #tpu.memory_space<vmem>>, vector<1x8x8xbf16>
    %21 = vector.shape_cast %20 : vector<1x8x8xbf16> to vector<8x8xbf16>
    %cst_7 = arith.constant dense<0.000000e+00> : vector<8x16xf32>
    %22 = tpu.matmul %21, %18, %cst_7 {dimension_numbers = #tpu.dot_dimension_numbers<[1], [0], [0], [1], [0, 0, 1, 1], [], []>} : vector<8x8xbf16>, vector<8x16xbf16>, vector<8x16xf32> -> vector<8x16xf32>
    %c1 = arith.constant 1 : index
    %c0_8 = arith.constant 0 : index
    %c0_9 = arith.constant 0 : index
    %23 = vector.load %arg2[%c1, %c0_8, %c0_9] : memref<3x8x8xbf16, #tpu.memory_space<vmem>>, vector<1x8x8xbf16>
    %24 = vector.shape_cast %23 : vector<1x8x8xbf16> to vector<8x8xbf16>
    %cst_10 = arith.constant dense<0.000000e+00> : vector<8x16xf32>
    %25 = tpu.matmul %24, %17, %cst_10 {dimension_numbers = #tpu.dot_dimension_numbers<[1], [0], [0], [1], [0, 0, 1, 1], [], []>} : vector<8x8xbf16>, vector<8x16xbf16>, vector<8x16xf32> -> vector<8x16xf32>
    %26 = arith.addf %22, %25 : vector<8x16xf32>
    %c2 = arith.constant 2 : index
    %c0_11 = arith.constant 0 : index
    %c0_12 = arith.constant 0 : index
    %27 = vector.load %arg2[%c2, %c0_11, %c0_12] : memref<3x8x8xbf16, #tpu.memory_space<vmem>>, vector<1x8x8xbf16>
    %28 = vector.shape_cast %27 : vector<1x8x8xbf16> to vector<8x8xbf16>
    %cst_13 = arith.constant dense<0.000000e+00> : vector<8x16xf32>
    %29 = tpu.matmul %28, %19, %cst_13 {dimension_numbers = #tpu.dot_dimension_numbers<[1], [0], [0], [1], [0, 0, 1, 1], [], []>} : vector<8x8xbf16>, vector<8x16xbf16>, vector<8x16xf32> -> vector<8x16xf32>
    %30 = arith.addf %26, %29 : vector<8x16xf32>
    %c0_14 = arith.constant 0 : index
    %c0_15 = arith.constant 0 : index
    %31 = vector.load %arg3[%c0_14, %c0_15] : memref<8x1xf32, #tpu.memory_space<vmem>>, vector<8x1xf32>
    %32 = vector.broadcast %31 : vector<8x1xf32> to vector<8x16xf32>
    %33 = arith.addf %30, %32 : vector<8x16xf32>
    %cst_16 = arith.constant 0.000000e+00 : f32
    %34 = vector.broadcast %cst_16 : f32 to vector<8x16xf32>
    %35 = arith.maximumf %33, %34 : vector<8x16xf32>
    %c1_i32_17 = arith.constant 1 : i32
    %36 = tpu.dynamic_rotate %35 by %c1_i32_17 dim 1 : vector<8x16xf32>, i32 -> vector<8x16xf32>
    %cst_18 = arith.constant 0.000000e+00 : f32
    %37 = vector.shape_cast %4 : vector<1x16xi1> to vector<1x16xi1>
    %38 = vector.broadcast %37 : vector<1x16xi1> to vector<8x16xi1>
    %39 = vector.broadcast %cst_18 : f32 to vector<8x16xf32>
    %40 = arith.select %38, %39, %36 : vector<8x16xi1>, vector<8x16xf32>
    %c15_i32_19 = arith.constant 15 : i32
    %41 = tpu.dynamic_rotate %35 by %c15_i32_19 dim 1 : vector<8x16xf32>, i32 -> vector<8x16xf32>
    %cst_20 = arith.constant 0.000000e+00 : f32
    %42 = vector.shape_cast %6 : vector<1x16xi1> to vector<1x16xi1>
    %43 = vector.broadcast %42 : vector<1x16xi1> to vector<8x16xi1>
    %44 = vector.broadcast %cst_20 : f32 to vector<8x16xf32>
    %45 = arith.select %43, %44, %41 : vector<8x16xi1>, vector<8x16xf32>
    %46 = arith.truncf %35 : vector<8x16xf32> to vector<8x16xbf16>
    %47 = arith.truncf %40 : vector<8x16xf32> to vector<8x16xbf16>
    %48 = arith.truncf %45 : vector<8x16xf32> to vector<8x16xbf16>
    %c0_21 = arith.constant 0 : index
    %c0_22 = arith.constant 0 : index
    %c0_23 = arith.constant 0 : index
    %49 = vector.load %arg4[%c0_21, %c0_22, %c0_23] : memref<3x8x8xbf16, #tpu.memory_space<vmem>>, vector<1x8x8xbf16>
    %50 = vector.shape_cast %49 : vector<1x8x8xbf16> to vector<8x8xbf16>
    %cst_24 = arith.constant dense<0.000000e+00> : vector<8x16xf32>
    %51 = tpu.matmul %50, %47, %cst_24 {dimension_numbers = #tpu.dot_dimension_numbers<[1], [0], [0], [1], [0, 0, 1, 1], [], []>} : vector<8x8xbf16>, vector<8x16xbf16>, vector<8x16xf32> -> vector<8x16xf32>
    %c1_25 = arith.constant 1 : index
    %c0_26 = arith.constant 0 : index
    %c0_27 = arith.constant 0 : index
    %52 = vector.load %arg4[%c1_25, %c0_26, %c0_27] : memref<3x8x8xbf16, #tpu.memory_space<vmem>>, vector<1x8x8xbf16>
    %53 = vector.shape_cast %52 : vector<1x8x8xbf16> to vector<8x8xbf16>
    %cst_28 = arith.constant dense<0.000000e+00> : vector<8x16xf32>
    %54 = tpu.matmul %53, %46, %cst_28 {dimension_numbers = #tpu.dot_dimension_numbers<[1], [0], [0], [1], [0, 0, 1, 1], [], []>} : vector<8x8xbf16>, vector<8x16xbf16>, vector<8x16xf32> -> vector<8x16xf32>
    %55 = arith.addf %51, %54 : vector<8x16xf32>
    %c2_29 = arith.constant 2 : index
    %c0_30 = arith.constant 0 : index
    %c0_31 = arith.constant 0 : index
    %56 = vector.load %arg4[%c2_29, %c0_30, %c0_31] : memref<3x8x8xbf16, #tpu.memory_space<vmem>>, vector<1x8x8xbf16>
    %57 = vector.shape_cast %56 : vector<1x8x8xbf16> to vector<8x8xbf16>
    %cst_32 = arith.constant dense<0.000000e+00> : vector<8x16xf32>
    %58 = tpu.matmul %57, %48, %cst_32 {dimension_numbers = #tpu.dot_dimension_numbers<[1], [0], [0], [1], [0, 0, 1, 1], [], []>} : vector<8x8xbf16>, vector<8x16xbf16>, vector<8x16xf32> -> vector<8x16xf32>
    %59 = arith.addf %55, %58 : vector<8x16xf32>
    %c0_33 = arith.constant 0 : index
    %c0_34 = arith.constant 0 : index
    %60 = vector.load %arg5[%c0_33, %c0_34] : memref<8x1xf32, #tpu.memory_space<vmem>>, vector<8x1xf32>
    %61 = vector.broadcast %60 : vector<8x1xf32> to vector<8x16xf32>
    %62 = arith.addf %59, %61 : vector<8x16xf32>
    %c0_35 = arith.constant 0 : index
    %c0_36 = arith.constant 0 : index
    %63 = vector.load %arg6[%c0_35, %c0_36] : memref<8x8xbf16, #tpu.memory_space<vmem>>, vector<8x8xbf16>
    %64 = arith.truncf %1 : vector<8x16xf32> to vector<8x16xbf16>
    %cst_37 = arith.constant dense<0.000000e+00> : vector<8x16xf32>
    %65 = tpu.matmul %63, %64, %cst_37 {dimension_numbers = #tpu.dot_dimension_numbers<[1], [0], [0], [1], [0, 0, 1, 1], [], []>} : vector<8x8xbf16>, vector<8x16xbf16>, vector<8x16xf32> -> vector<8x16xf32>
    %66 = arith.addf %62, %65 : vector<8x16xf32>
    %cst_38 = arith.constant 0.000000e+00 : f32
    %67 = vector.broadcast %cst_38 : f32 to vector<8x16xf32>
    %68 = arith.maximumf %66, %67 : vector<8x16xf32>
    %c0_39 = arith.constant 0 : index
    %c0_40 = arith.constant 0 : index
    %c0_41 = arith.constant 0 : index
    %69 = vector.load %arg7[%c0_39, %c0_40, %c0_41] : memref<1x8x16xf32, #tpu.memory_space<vmem>>, vector<1x8x16xf32>
    %70 = vector.shape_cast %69 : vector<1x8x16xf32> to vector<8x16xf32>
    %71 = vector.shape_cast %68 : vector<8x16xf32> to vector<1x8x16xf32>
    tpu.vector_store %arg7[%c0_39, %c0_40, %c0_41], %71 {strides = array<i32>} : memref<1x8x16xf32, #tpu.memory_space<vmem>>, vector<1x8x16xf32>,
    return
  }
  func.func @transform_0(%arg0: i32) -> (i32, i32, i32) {
    %c0_i32 = arith.constant 0 : i32
    %c0_i32_0 = arith.constant 0 : i32
    %c0_i32_1 = arith.constant 0 : i32
    return %arg0, %c0_i32, %c0_i32_0 : i32, i32, i32
  }
  func.func @transform_1(%arg0: i32) -> (i32, i32, i32) {
    %c0_i32 = arith.constant 0 : i32
    %c0_i32_0 = arith.constant 0 : i32
    %c0_i32_1 = arith.constant 0 : i32
    %c0_i32_2 = arith.constant 0 : i32
    return %c0_i32, %c0_i32_0, %c0_i32_1 : i32, i32, i32
  }
  func.func @transform_2(%arg0: i32) -> (i32, i32) {
    %c0_i32 = arith.constant 0 : i32
    %c0_i32_0 = arith.constant 0 : i32
    %c0_i32_1 = arith.constant 0 : i32
    return %c0_i32, %c0_i32_0 : i32, i32
  }
  func.func @transform_3(%arg0: i32) -> (i32, i32, i32) {
    %c0_i32 = arith.constant 0 : i32
    %c0_i32_0 = arith.constant 0 : i32
    %c0_i32_1 = arith.constant 0 : i32
    %c0_i32_2 = arith.constant 0 : i32
    return %c0_i32, %c0_i32_0, %c0_i32_1 : i32, i32, i32
  }
  func.func @transform_4(%arg0: i32) -> (i32, i32) {
    %c0_i32 = arith.constant 0 : i32
    %c0_i32_0 = arith.constant 0 : i32
    %c0_i32_1 = arith.constant 0 : i32
    return %c0_i32, %c0_i32_0 : i32, i32
  }
  func.func @transform_5(%arg0: i32) -> (i32, i32) {
    %c0_i32 = arith.constant 0 : i32
    %c0_i32_0 = arith.constant 0 : i32
    %c0_i32_1 = arith.constant 0 : i32
    return %c0_i32, %c0_i32_0 : i32, i32
  }
  func.func @transform_6(%arg0: i32) -> (i32, i32, i32) {
    %c0_i32 = arith.constant 0 : i32
    %c0_i32_0 = arith.constant 0 : i32
    %c0_i32_1 = arith.constant 0 : i32
    return %arg0, %c0_i32, %c0_i32_0 : i32, i32, i32
  }
}

</mosaic_0001>

<llo_original>
// kernel: tpu_custom_call.1
$region0: #{tpu_custom_call.1}
  #allocation0 [shape = 'u32[]', space=smem, size = 0x4, offset = 0x4, fixed_abs, tag = 'smem constant byte address 0x4 - core index']
  #allocation1 [shape = 'u32[144,128]{1,0:T(1,128)}', space=vmem, size = 0x12000, scoped, tag = 'internal scratch']
  %s0 = inlined_call_operand.vmem [shape: f32[2,8,16], index: 0, kind: input, shape index: {}]
  %s1 = inlined_call_operand.hbm [shape: bf16[3,8,8], index: 1, kind: input, shape index: {}]
  %s2 = inlined_call_operand.vmem [shape: f32[8,1], index: 2, kind: input, shape index: {}]
  %s3 = inlined_call_operand.vmem [shape: bf16[3,8,8], index: 3, kind: input, shape index: {}]
  %s4 = inlined_call_operand.vmem [shape: f32[8,1], index: 4, kind: input, shape index: {}]
  %s5 = inlined_call_operand.vmem [shape: bf16[8,8], index: 5, kind: input, shape index: {}]
  %s6 = inlined_call_operand.hbm [shape: f32[2,8,16], index: 6, kind: output, shape index: {}]
  %s7 = sld [smem:[#allocation0]]
  $region61: #{tpu_custom_call.1} parent=0
    _
  %s9 = ssub.s32 1, %s7
  %s10 = scalar_select 0, %s9, %s7
  $region1: #{tpu_custom_call.1} parent=0
    #allocation2 [shape = 'u8[6144]{0}', space=vmem, size = 0x1800, scoped, tag = 'input window, operand 1, single buffered']
    #allocation3 [shape = 's32[2]{0}', space=sflag, size = 0x8, scoped, tag = 'scoped memory for tpu_custom_call.1']
    #allocation4 [shape = 's32[2]{0}', space=sflag, size = 0x8, scoped, tag = 'scoped memory for tpu_custom_call.1']
    #allocation5 [shape = 'u8[8192]{0}', space=vmem, size = 0x2000, scoped, tag = 'output window, operand 0']
    %11 = vsyncpa [#allocation3], 0
    %12 = vsyncpa [#allocation4], 0
    %s13 = scalar_lea.sflag [#allocation4], 1
    %14 = vsyncpa %s13, 0
    loop: start=0, step=1, limit=4
    $region2: #{tpu_custom_call.1} parent=1 // loop_pre_header
      _
    $region3: #{tpu_custom_call.1} parent=1 // loop_header
      %s16 = sphi 0, %s20
      %p17 = scmp.ge.s32.totalorder %s16, 4
      %s26 = sphi 0, %s28
      %s29 = sphi 0, %s26
      %s30 = sphi 0, %s29
      %s46 = sphi 0, %s30
      %s50 = sphi 0, %s50
      %s52 = sphi 0, %s50
      %s53 = sphi 0, %s52
      %s67 = sphi 0, %s53
      %s71 = sphi 0, %s71
      %s73 = sphi 0, %s71
      %s74 = sphi 0, %s73
      %s88 = sphi 0, %s74
      %s92 = sphi 0, %s92
      %s94 = sphi 0, %s92
      %s95 = sphi 0, %s94
      %s109 = sphi 0, %s95
      %s113 = sphi 0, %s113
      %s115 = sphi 0, %s113
      %s116 = sphi 0, %s115
      %s130 = sphi 0, %s116
      %s134 = sphi 0, %s134
      %s136 = sphi 0, %s134
      %s137 = sphi 0, %s136
      %s151 = sphi 0, %s137
      %s157 = sphi 0, %s159
      %s160 = sphi 0, %s157
      %s161 = sphi 0, %s160
      %s177 = sphi 0, %s161
    $region4: #{tpu_custom_call.1} parent=1 // loop_header_branch
      %19 = sbr.rel (%p17) target = $region8
    $region5: #{tpu_custom_call.1} parent=1 // loop_body
      %s21 = ssub.s32 %s16, 1
      %s22 = ssub.s32 %s16, 2
      %s23 = sadd.s32 %s16, 1
      %s24 = ssub.s32 %s16, %s23
      %p25 = scmp.eq.s32.totalorder %s24, 0
      %s27 = sadd.s32 %s26, 1
      %s28 = scalar_select %p25, %s26, %s27
      %p31 = pneg %p25
      %p32 = scmp.eq.s32.totalorder %s16, 1
      %p33 = por %p31, %p32
      %p34 = scmp.ne.s32.totalorder %s26, %s29
      %p35 = scmp.eq.s32.totalorder %s16, 0
      %p36 = por %p34, %p35
      %p37 = scmp.ne.s32.totalorder %s26, %s29
      %p38 = scmp.eq.s32.totalorder %s21, 1
      %p39 = por %p37, %p38
      %p40 = scmp.ne.s32.totalorder %s29, %s30
      %p41 = scmp.eq.s32.totalorder %s21, 0
      %p42 = por %p40, %p41
      %p43 = scmp.ne.s32.totalorder %s29, %s30
      %p44 = scmp.eq.s32.totalorder %s22, 1
      %p45 = por %p43, %p44
      %p47 = scmp.ne.s32.totalorder %s30, %s46
      %p48 = scmp.eq.s32.totalorder %s22, 0
      %p49 = por %p47, %p48
      %s51 = sadd.s32 %s50, 1
      %p54 = scmp.eq.s32.totalorder %s16, 1
      %p55 = scmp.ne.s32.totalorder %s50, %s52
      %p56 = scmp.eq.s32.totalorder %s16, 0
      %p57 = por %p55, %p56
      %p58 = scmp.ne.s32.totalorder %s50, %s52
      %p59 = scmp.eq.s32.totalorder %s21, 1
      %p60 = por %p58, %p59
      %p61 = scmp.ne.s32.totalorder %s52, %s53
      %p62 = scmp.eq.s32.totalorder %s21, 0
      %p63 = por %p61, %p62
      %p64 = scmp.ne.s32.totalorder %s52, %s53
      %p65 = scmp.eq.s32.totalorder %s22, 1
      %p66 = por %p64, %p65
      %p68 = scmp.ne.s32.totalorder %s53, %s67
      %p69 = scmp.eq.s32.totalorder %s22, 0
      %p70 = por %p68, %p69
      %s72 = sadd.s32 %s71, 1
      %p75 = scmp.eq.s32.totalorder %s16, 1
      %p76 = scmp.ne.s32.totalorder %s71, %s73
      %p77 = scmp.eq.s32.totalorder %s16, 0
      %p78 = por %p76, %p77
      %p79 = scmp.ne.s32.totalorder %s71, %s73
      %p80 = scmp.eq.s32.totalorder %s21, 1
      %p81 = por %p79, %p80
      %p82 = scmp.ne.s32.totalorder %s73, %s74
      %p83 = scmp.eq.s32.totalorder %s21, 0
      %p84 = por %p82, %p83
      %p85 = scmp.ne.s32.totalorder %s73, %s74
      %p86 = scmp.eq.s32.totalorder %s22, 1
      %p87 = por %p85, %p86
      %p89 = scmp.ne.s32.totalorder %s74, %s88
      %p90 = scmp.eq.s32.totalorder %s22, 0
      %p91 = por %p89, %p90
      %s93 = sadd.s32 %s92, 1
      %p96 = scmp.eq.s32.totalorder %s16, 1
      %p97 = scmp.ne.s32.totalorder %s92, %s94
      %p98 = scmp.eq.s32.totalorder %s16, 0
      %p99 = por %p97, %p98
      %p100 = scmp.ne.s32.totalorder %s92, %s94
      %p101 = scmp.eq.s32.totalorder %s21, 1
      %p102 = por %p100, %p101
      %p103 = scmp.ne.s32.totalorder %s94, %s95
      %p104 = scmp.eq.s32.totalorder %s21, 0
      %p105 = por %p103, %p104
      %p106 = scmp.ne.s32.totalorder %s94, %s95
      %p107 = scmp.eq.s32.totalorder %s22, 1
      %p108 = por %p106, %p107
      %p110 = scmp.ne.s32.totalorder %s95, %s109
      %p111 = scmp.eq.s32.totalorder %s22, 0
      %p112 = por %p110, %p111
      %s114 = sadd.s32 %s113, 1
      %p117 = scmp.eq.s32.totalorder %s16, 1
      %p118 = scmp.ne.s32.totalorder %s113, %s115
      %p119 = scmp.eq.s32.totalorder %s16, 0
      %p120 = por %p118, %p119
      %p121 = scmp.ne.s32.totalorder %s113, %s115
      %p122 = scmp.eq.s32.totalorder %s21, 1
      %p123 = por %p121, %p122
      %p124 = scmp.ne.s32.totalorder %s115, %s116
      %p125 = scmp.eq.s32.totalorder %s21, 0
      %p126 = por %p124, %p125
      %p127 = scmp.ne.s32.totalorder %s115, %s116
      %p128 = scmp.eq.s32.totalorder %s22, 1
      %p129 = por %p127, %p128
      %p131 = scmp.ne.s32.totalorder %s116, %s130
      %p132 = scmp.eq.s32.totalorder %s22, 0
      %p133 = por %p131, %p132
      %s135 = sadd.s32 %s134, 1
      %p138 = scmp.eq.s32.totalorder %s16, 1
      %p139 = scmp.ne.s32.totalorder %s134, %s136
      %p140 = scmp.eq.s32.totalorder %s16, 0
      %p141 = por %p139, %p140
      %p142 = scmp.ne.s32.totalorder %s134, %s136
      %p143 = scmp.eq.s32.totalorder %s21, 1
      %p144 = por %p142, %p143
      %p145 = scmp.ne.s32.totalorder %s136, %s137
      %p146 = scmp.eq.s32.totalorder %s21, 0
      %p147 = por %p145, %p146
      %p148 = scmp.ne.s32.totalorder %s136, %s137
      %p149 = scmp.eq.s32.totalorder %s22, 1
      %p150 = por %p148, %p149
      %p152 = scmp.ne.s32.totalorder %s137, %s151
      %p153 = scmp.eq.s32.totalorder %s22, 0
      %p154 = por %p152, %p153
      %s155 = ssub.s32 %s16, %s23
      %p156 = scmp.eq.s32.totalorder %s155, 0
      %s158 = sadd.s32 %s157, 1
      %s159 = scalar_select %p156, %s157, %s158
      %p162 = pneg %p156
      %p163 = scmp.eq.s32.totalorder %s16, 1
      %p164 = por %p162, %p163
      %p165 = scmp.ne.s32.totalorder %s157, %s160
      %p166 = scmp.eq.s32.totalorder %s16, 0
      %p167 = por %p165, %p166
      %p168 = scmp.ne.s32.totalorder %s157, %s160
      %p169 = scmp.eq.s32.totalorder %s21, 1
      %p170 = por %p168, %p169
      %p171 = scmp.ne.s32.totalorder %s160, %s161
      %p172 = scmp.eq.s32.totalorder %s21, 0
      %p173 = por %p171, %p172
      %p174 = scmp.ne.s32.totalorder %s160, %s161
      %p175 = scmp.eq.s32.totalorder %s22, 1
      %p176 = por %p174, %p175
      %p178 = scmp.ne.s32.totalorder %s161, %s177
      %p179 = scmp.eq.s32.totalorder %s22, 0
      %p180 = por %p178, %p179
      %p181 = scmp.le.s32.totalorder 1, %s16
      %p182 = scmp.lt.s32.totalorder %s16, 3
      %p183 = pnand %p181, %p182
      %p184 = pneg %p183
      // Predicated region
      $region9: #{tpu_custom_call.1} parent=5 // pred_check
        _
      $region10: #{tpu_custom_call.1} parent=5 // pred_check_branch
        %186 = sbr.rel (%p183) target = $region12
      $region11: #{tpu_custom_call.1} parent=5 // pred_region
        %s187 = ssub.s32 %s16, 1
        // Predicated region
        $region13: #{tpu_custom_call.1} parent=11 // pred_check
          %p188 = pneg %p63
        $region14: #{tpu_custom_call.1} parent=11 // pred_check_branch
          %190 = sbr.rel (%p188) target = $region16
        $region15: #{tpu_custom_call.1} parent=11 // pred_region
          %s192 = ssub.s32 192, 192
          %193 = vsyncadd [#allocation3], %s192
          %s194 = sshll.u32 [#allocation2], 4
          %s195 = int_to_ptr.vmem [resolvable:$true] %s194
          %200 = dma.hbm_to_vmem [thread:$0]  %s1, 192, %s195, [#allocation3], 64, 64, 4
        $region16: #{tpu_custom_call.1} parent=11 // pred_fallthru
          _
        // Predicated region
        $region17: #{tpu_custom_call.1} parent=11 // pred_check
          %p201 = pneg %p84
        $region18: #{tpu_custom_call.1} parent=11 // pred_check_branch
          %203 = sbr.rel (%p201) target = $region20
        $region19: #{tpu_custom_call.1} parent=11 // pred_region
          _
        $region20: #{tpu_custom_call.1} parent=11 // pred_fallthru
          _
        // Predicated region
        $region21: #{tpu_custom_call.1} parent=11 // pred_check
          %p204 = pneg %p105
        $region22: #{tpu_custom_call.1} parent=11 // pred_check_branch
          %206 = sbr.rel (%p204) target = $region24
        $region23: #{tpu_custom_call.1} parent=11 // pred_region
          _
        $region24: #{tpu_custom_call.1} parent=11 // pred_fallthru
          _
        // Predicated region
        $region25: #{tpu_custom_call.1} parent=11 // pred_check
          %p207 = pneg %p126
        $region26: #{tpu_custom_call.1} parent=11 // pred_check_branch
          %209 = sbr.rel (%p207) target = $region28
        $region27: #{tpu_custom_call.1} parent=11 // pred_region
          _
        $region28: #{tpu_custom_call.1} parent=11 // pred_fallthru
          _
        // Predicated region
        $region29: #{tpu_custom_call.1} parent=11 // pred_check
          %p210 = pneg %p147
        $region30: #{tpu_custom_call.1} parent=11 // pred_check_branch
          %212 = sbr.rel (%p210) target = $region32
        $region31: #{tpu_custom_call.1} parent=11 // pred_region
          _
        $region32: #{tpu_custom_call.1} parent=11 // pred_fallthru
          _
      $region12: #{tpu_custom_call.1} parent=5 // pred_fallthru
        _
      %p213 = scmp.lt.s32.totalorder %s16, 2
      // Predicated region
      $region33: #{tpu_custom_call.1} parent=5 // pred_check
        %p214 = pneg %p213
      $region34: #{tpu_custom_call.1} parent=5 // pred_check_branch
        %216 = sbr.rel (%p214) target = $region36
      $region35: #{tpu_custom_call.1} parent=5 // pred_region
        // Predicated region
        $region37: #{tpu_custom_call.1} parent=35 // pred_check
          %p217 = pneg %p36
        $region38: #{tpu_custom_call.1} parent=35 // pred_check_branch
          %219 = sbr.rel (%p217) target = $region40
        $region39: #{tpu_custom_call.1} parent=35 // pred_region
          %p220 = scmp.lt.s32.totalorder %s16, 1
          %s221 = scalar_select %p220, %s16, 1
          %s222 = smul.addr %s221, 8
          %s223 = scalar_lea.vmem %s0, %s222
        $region40: #{tpu_custom_call.1} parent=35 // pred_fallthru
          _
      $region36: #{tpu_custom_call.1} parent=5 // pred_fallthru
        _
      %p224 = scmp.le.s32.totalorder 1, %s16
      %p225 = scmp.lt.s32.totalorder %s16, 3
      %p226 = pnand %p224, %p225
      %p227 = pneg %p226
      // Predicated region
      $region41: #{tpu_custom_call.1} parent=5 // pred_check
        _
      $region42: #{tpu_custom_call.1} parent=5 // pred_check_branch
        %229 = sbr.rel (%p226) target = $region44
      $region43: #{tpu_custom_call.1} parent=5 // pred_region
        %s230 = ssub.s32 %s16, 1
        // Predicated region
        $region45: #{tpu_custom_call.1} parent=43 // pred_check
          %p231 = pneg %p63
        $region46: #{tpu_custom_call.1} parent=43 // pred_check_branch
          %233 = sbr.rel (%p231) target = $region48
        $region47: #{tpu_custom_call.1} parent=43 // pred_region
          %234 = dma.done [#allocation3], 192
        $region48: #{tpu_custom_call.1} parent=43 // pred_fallthru
          _
        %p235 = scmp.lt.s32.totalorder %s21, 1
        %s236 = scalar_select %p235, %s21, 1
        %s237 = smul.addr %s236, 8
        %s238 = scalar_lea.vmem %s0, %s237
        %p239 = pneg %p42
        %p240 = pneg %p39
        %p241 = pneg %p63
        %p242 = pneg %p60
        %p243 = pneg %p84
        %p244 = pneg %p81
        %p245 = pneg %p105
        %p246 = pneg %p102
        %p247 = pneg %p126
        %p248 = pneg %p123
        %p249 = pneg %p147
        %p250 = pneg %p144
        %p251 = pneg %p173
        %p252 = pneg %p170
        %s253 = sand.u32 %s160, 1
        %s254 = scalar_lea.sflag [#allocation4], %s253
        %s255 = sand.u32 %s160, 1
        %s256 = smul.addr %s255, 8
        %s257 = scalar_lea.vmem [#allocation5], %s256
        %p258 = scmp.lt.s32.totalorder %s21, 1
        %s259 = scalar_select %p258, %s21, 1
        %s260 = smul.addr %s259, 8
        %s261 = scalar_lea.vmem %s0, %s260
        %v263 = vld [vmem:[%s261] sm:$0xff]
        %v264 = vlaneseq
        %v265 = vand.u32 %v264, 127
        %vm266 = vcmp.eq.s32.totalorder %v265, 0
        %vm267 = vcmp.eq.s32.totalorder %v265, 15
        %vm268 = vcmask 1047680
        %269 = vrot.lane.b32.xlu0 %v263, 16
        %v270 = vpop.permute.xlu0 %269
        %v271 = vsel %vm268, %v270, %v263
        %272 = vrot.lane.b32.xlu0 %v271, 16
        %v273 = vpop.permute.xlu0 %272
        %v274 = vsel %vm268, %v273, %v263
        %v275 = vsel %vm266, 1, 0
        %vm276 = vcmp.eq.s32.totalorder %v275, 1
        %278 = vrot.lane.b32.xlu0 %v274, 113
        %v279 = vpop.permute.xlu0 %278
        %v281 = vsel %vm276, 0.0, %v279
        %v282 = vsel %vm267, 1, 0
        %vm283 = vcmp.eq.s32.totalorder %v282, 1
        %284 = vrot.lane.b32.xlu0 %v274, 127
        %v285 = vpop.permute.xlu0 %284
        %v287 = vsel %vm283, 0.0, %v285
        %v288 = vpack.c.bf16 %v263, %v263
        %v289 = vpack.c.bf16 %v281, %v281
        %v290 = vpack.c.bf16 %v287, %v287
        %v291 = vld [vmem:[#allocation2] sm:$0xf]
        %s292 = scalar_lea.vmem [#allocation2], 4
        %v293 = vld [vmem:[%s292] sm:$0xf]
        %vm294 = vcmask 64512
        %v296 = vsel %vm294, %v293, 0
        %vm298 = vcmask 1043456
        %v300 = vsel %vm298, %v288, 0
        %302 = vmatprep.subr.bf16.mxu0 0
        %303 = vmatpush1.bf16.msra.mxu0 %v300
        %304 = vmatprep.subr.bf16.mxu0 0
        %305 = vmatpush1.bf16.msra.mxu0 0
        %306 = vmatprep.subr.bf16.mxu0 0
        %307 = vmatpush1.bf16.msra.mxu0 0
        %308 = vmatprep.subr.bf16.mxu0 0
        %309 = vmatpush1.bf16.msra.mxu0 0
        %310 = vmatprep.subr.bf16.mxu0 0
        %311 = vmatpush1.bf16.msra.mxu0 0
        %312 = vmatprep.subr.bf16.mxu0 0
        %313 = vmatpush1.bf16.msra.mxu0 0
        %314 = vmatprep.subr.bf16.mxu0 0
        %315 = vmatpush1.bf16.msra.mxu0 0
        %316 = vmatprep.subr.bf16.mxu0 0
        %317 = vmatpush1.bf16.msra.mxu0 0
        %318 = vmatprep.subr.bf16.mxu0 0
        %319 = vmatpush1.bf16.msra.mxu0 0
        %320 = vmatprep.subr.bf16.mxu0 0
        %321 = vmatpush1.bf16.msra.mxu0 0
        %322 = vmatprep.subr.bf16.mxu0 0
        %323 = vmatpush1.bf16.msra.mxu0 0
        %324 = vmatprep.subr.bf16.mxu0 0
        %325 = vmatpush1.bf16.msra.mxu0 0
        %326 = vmatprep.subr.bf16.mxu0 0
        %327 = vmatpush1.bf16.msra.mxu0 0
        %328 = vmatprep.subr.bf16.mxu0 0
        %329 = vmatpush1.bf16.msra.mxu0 0
        %330 = vmatprep.subr.bf16.mxu0 0
        %331 = vmatpush1.bf16.msra.mxu0 0
        %332 = vmatprep.subr.bf16.mxu0 0
        %333 = vmatpush1.bf16.msra.mxu0 0
        %334 = vmatprep.mubr.bf16.mxu0 0
        %335 = vmatmul.mubr.bf16.gmra.mrb[0].mxu0 %v296
        %v336 = vpop.f32.mrb[0].mxu0
        %v337 = vadd.f32 0.0, %v336
        %v338 = vpop.f32.mrb[0].mxu0
        %v339 = vpop.f32.mrb[0].mxu0
        %v340 = vpop.f32.mrb[0].mxu0
        %341 = vdwg.mxu0
        %v343 = vsel %vm294, %v291, 0
        %v346 = vsel %vm298, %v289, 0
        %348 = vmatprep.subr.bf16.mxu0 0
        %349 = vmatpush1.bf16.msra.mxu0 %v346
        %350 = vmatprep.subr.bf16.mxu0 0
        %351 = vmatpush1.bf16.msra.mxu0 0
        %352 = vmatprep.subr.bf16.mxu0 0
        %353 = vmatpush1.bf16.msra.mxu0 0
        %354 = vmatprep.subr.bf16.mxu0 0
        %355 = vmatpush1.bf16.msra.mxu0 0
        %356 = vmatprep.subr.bf16.mxu0 0
        %357 = vmatpush1.bf16.msra.mxu0 0
        %358 = vmatprep.subr.bf16.mxu0 0
        %359 = vmatpush1.bf16.msra.mxu0 0
        %360 = vmatprep.subr.bf16.mxu0 0
        %361 = vmatpush1.bf16.msra.mxu0 0
        %362 = vmatprep.subr.bf16.mxu0 0
        %363 = vmatpush1.bf16.msra.mxu0 0
        %364 = vmatprep.subr.bf16.mxu0 0
        %365 = vmatpush1.bf16.msra.mxu0 0
        %366 = vmatprep.subr.bf16.mxu0 0
        %367 = vmatpush1.bf16.msra.mxu0 0
        %368 = vmatprep.subr.bf16.mxu0 0
        %369 = vmatpush1.bf16.msra.mxu0 0
        %370 = vmatprep.subr.bf16.mxu0 0
        %371 = vmatpush1.bf16.msra.mxu0 0
        %372 = vmatprep.subr.bf16.mxu0 0
        %373 = vmatpush1.bf16.msra.mxu0 0
        %374 = vmatprep.subr.bf16.mxu0 0
        %375 = vmatpush1.bf16.msra.mxu0 0
        %376 = vmatprep.subr.bf16.mxu0 0
        %377 = vmatpush1.bf16.msra.mxu0 0
        %378 = vmatprep.subr.bf16.mxu0 0
        %379 = vmatpush1.bf16.msra.mxu0 0
        %380 = vmatprep.mubr.bf16.mxu0 0
        %381 = vmatmul.mubr.bf16.gmra.mrb[0].mxu0 %v343
        %v382 = vpop.f32.mrb[0].mxu0
        %v383 = vadd.f32 %v337, %v382
        %v384 = vpop.f32.mrb[0].mxu0
        %v385 = vpop.f32.mrb[0].mxu0
        %v386 = vpop.f32.mrb[0].mxu0
        %387 = vdwg.mxu0
        %s388 = scalar_lea.vmem [#allocation2], 8
        %v389 = vld [vmem:[%s388] sm:$0xf]
        %v391 = vsel %vm294, %v389, 0
        %v394 = vsel %vm298, %v290, 0
        %396 = vmatprep.subr.bf16.mxu0 0
        %397 = vmatpush1.bf16.msra.mxu0 %v394
        %398 = vmatprep.subr.bf16.mxu0 0
        %399 = vmatpush1.bf16.msra.mxu0 0
        %400 = vmatprep.subr.bf16.mxu0 0
        %401 = vmatpush1.bf16.msra.mxu0 0
        %402 = vmatprep.subr.bf16.mxu0 0
        %403 = vmatpush1.bf16.msra.mxu0 0
        %404 = vmatprep.subr.bf16.mxu0 0
        %405 = vmatpush1.bf16.msra.mxu0 0
        %406 = vmatprep.subr.bf16.mxu0 0
        %407 = vmatpush1.bf16.msra.mxu0 0
        %408 = vmatprep.subr.bf16.mxu0 0
        %409 = vmatpush1.bf16.msra.mxu0 0
        %410 = vmatprep.subr.bf16.mxu0 0
        %411 = vmatpush1.bf16.msra.mxu0 0
        %412 = vmatprep.subr.bf16.mxu0 0
        %413 = vmatpush1.bf16.msra.mxu0 0
        %414 = vmatprep.subr.bf16.mxu0 0
        %415 = vmatpush1.bf16.msra.mxu0 0
        %416 = vmatprep.subr.bf16.mxu0 0
        %417 = vmatpush1.bf16.msra.mxu0 0
        %418 = vmatprep.subr.bf16.mxu0 0
        %419 = vmatpush1.bf16.msra.mxu0 0
        %420 = vmatprep.subr.bf16.mxu0 0
        %421 = vmatpush1.bf16.msra.mxu0 0
        %422 = vmatprep.subr.bf16.mxu0 0
        %423 = vmatpush1.bf16.msra.mxu0 0
        %424 = vmatprep.subr.bf16.mxu0 0
        %425 = vmatpush1.bf16.msra.mxu0 0
        %426 = vmatprep.subr.bf16.mxu0 0
        %427 = vmatpush1.bf16.msra.mxu0 0
        %428 = vmatprep.mubr.bf16.mxu0 0
        %429 = vmatmul.mubr.bf16.gmra.mrb[0].mxu0 %v391
        %v430 = vpop.f32.mrb[0].mxu0
        %v431 = vadd.f32 0.0, %v430
        %v432 = vpop.f32.mrb[0].mxu0
        %v433 = vpop.f32.mrb[0].mxu0
        %v434 = vpop.f32.mrb[0].mxu0
        %435 = vdwg.mxu0
        %v436 = vadd.f32 %v383, %v431
        %v437 = vld [vmem:[%s2] sm:$0xff]
        %439 = vset.pattern.permute.xlu0 0
        %440 = vperm.xlu0 %439, %v437
        %v441 = vpop.permute.xlu0 %440
        %v443 = vadd.f32 %v436, %v441
        %v444 = vmax.f32 %v443, 0.0
        %445 = vrot.lane.b32.xlu0 %v444, 16
        %v446 = vpop.permute.xlu0 %445
        %v447 = vsel %vm268, %v446, %v444
        %448 = vrot.lane.b32.xlu0 %v447, 16
        %v449 = vpop.permute.xlu0 %448
        %v450 = vsel %vm268, %v449, %v444
        %452 = vrot.lane.b32.xlu0 %v450, 113
        %v453 = vpop.permute.xlu0 %452
        %v455 = vsel %vm276, 0.0, %v453
        %456 = vrot.lane.b32.xlu0 %v450, 127
        %v457 = vpop.permute.xlu0 %456
        %v459 = vsel %vm283, 0.0, %v457
        %v460 = vpack.c.bf16 %v444, %v444
        %v461 = vpack.c.bf16 %v455, %v455
        %v462 = vpack.c.bf16 %v459, %v459
        %v463 = vld [vmem:[%s3] sm:$0xf]
        %s464 = scalar_lea.vmem %s3, 4
        %v465 = vld [vmem:[%s464] sm:$0xf]
        %v467 = vsel %vm294, %v465, 0
        %v470 = vsel %vm298, %v460, 0
        %472 = vmatprep.subr.bf16.mxu0 0
        %473 = vmatpush1.bf16.msra.mxu0 %v470
        %474 = vmatprep.subr.bf16.mxu0 0
        %475 = vmatpush1.bf16.msra.mxu0 0
        %476 = vmatprep.subr.bf16.mxu0 0
        %477 = vmatpush1.bf16.msra.mxu0 0
        %478 = vmatprep.subr.bf16.mxu0 0
        %479 = vmatpush1.bf16.msra.mxu0 0
        %480 = vmatprep.subr.bf16.mxu0 0
        %481 = vmatpush1.bf16.msra.mxu0 0
        %482 = vmatprep.subr.bf16.mxu0 0
        %483 = vmatpush1.bf16.msra.mxu0 0
        %484 = vmatprep.subr.bf16.mxu0 0
        %485 = vmatpush1.bf16.msra.mxu0 0
        %486 = vmatprep.subr.bf16.mxu0 0
        %487 = vmatpush1.bf16.msra.mxu0 0
        %488 = vmatprep.subr.bf16.mxu0 0
        %489 = vmatpush1.bf16.msra.mxu0 0
        %490 = vmatprep.subr.bf16.mxu0 0
        %491 = vmatpush1.bf16.msra.mxu0 0
        %492 = vmatprep.subr.bf16.mxu0 0
        %493 = vmatpush1.bf16.msra.mxu0 0
        %494 = vmatprep.subr.bf16.mxu0 0
        %495 = vmatpush1.bf16.msra.mxu0 0
        %496 = vmatprep.subr.bf16.mxu0 0
        %497 = vmatpush1.bf16.msra.mxu0 0
        %498 = vmatprep.subr.bf16.mxu0 0
        %499 = vmatpush1.bf16.msra.mxu0 0
        %500 = vmatprep.subr.bf16.mxu0 0
        %501 = vmatpush1.bf16.msra.mxu0 0
        %502 = vmatprep.subr.bf16.mxu0 0
        %503 = vmatpush1.bf16.msra.mxu0 0
        %504 = vmatprep.mubr.bf16.mxu0 0
        %505 = vmatmul.mubr.bf16.gmra.mrb[0].mxu0 %v467
        %v506 = vpop.f32.mrb[0].mxu0
        %v507 = vadd.f32 0.0, %v506
        %v508 = vpop.f32.mrb[0].mxu0
        %v509 = vpop.f32.mrb[0].mxu0
        %v510 = vpop.f32.mrb[0].mxu0
        %511 = vdwg.mxu0
        %v513 = vsel %vm294, %v463, 0
        %v516 = vsel %vm298, %v461, 0
        %518 = vmatprep.subr.bf16.mxu0 0
        %519 = vmatpush1.bf16.msra.mxu0 %v516
        %520 = vmatprep.subr.bf16.mxu0 0
        %521 = vmatpush1.bf16.msra.mxu0 0
        %522 = vmatprep.subr.bf16.mxu0 0
        %523 = vmatpush1.bf16.msra.mxu0 0
        %524 = vmatprep.subr.bf16.mxu0 0
        %525 = vmatpush1.bf16.msra.mxu0 0
        %526 = vmatprep.subr.bf16.mxu0 0
        %527 = vmatpush1.bf16.msra.mxu0 0
        %528 = vmatprep.subr.bf16.mxu0 0
        %529 = vmatpush1.bf16.msra.mxu0 0
        %530 = vmatprep.subr.bf16.mxu0 0
        %531 = vmatpush1.bf16.msra.mxu0 0
        %532 = vmatprep.subr.bf16.mxu0 0
        %533 = vmatpush1.bf16.msra.mxu0 0
        %534 = vmatprep.subr.bf16.mxu0 0
        %535 = vmatpush1.bf16.msra.mxu0 0
        %536 = vmatprep.subr.bf16.mxu0 0
        %537 = vmatpush1.bf16.msra.mxu0 0
        %538 = vmatprep.subr.bf16.mxu0 0
        %539 = vmatpush1.bf16.msra.mxu0 0
        %540 = vmatprep.subr.bf16.mxu0 0
        %541 = vmatpush1.bf16.msra.mxu0 0
        %542 = vmatprep.subr.bf16.mxu0 0
        %543 = vmatpush1.bf16.msra.mxu0 0
        %544 = vmatprep.subr.bf16.mxu0 0
        %545 = vmatpush1.bf16.msra.mxu0 0
        %546 = vmatprep.subr.bf16.mxu0 0
        %547 = vmatpush1.bf16.msra.mxu0 0
        %548 = vmatprep.subr.bf16.mxu0 0
        %549 = vmatpush1.bf16.msra.mxu0 0
        %550 = vmatprep.mubr.bf16.mxu0 0
        %551 = vmatmul.mubr.bf16.gmra.mrb[0].mxu0 %v513
        %v552 = vpop.f32.mrb[0].mxu0
        %v553 = vadd.f32 %v507, %v552
        %v554 = vpop.f32.mrb[0].mxu0
        %v555 = vpop.f32.mrb[0].mxu0
        %v556 = vpop.f32.mrb[0].mxu0
        %557 = vdwg.mxu0
        %s558 = scalar_lea.vmem %s3, 8
        %v559 = vld [vmem:[%s558] sm:$0xf]
        %v561 = vsel %vm294, %v559, 0
        %v564 = vsel %vm298, %v462, 0
        %566 = vmatprep.subr.bf16.mxu0 0
        %567 = vmatpush1.bf16.msra.mxu0 %v564
        %568 = vmatprep.subr.bf16.mxu0 0
        %569 = vmatpush1.bf16.msra.mxu0 0
        %570 = vmatprep.subr.bf16.mxu0 0
        %571 = vmatpush1.bf16.msra.mxu0 0
        %572 = vmatprep.subr.bf16.mxu0 0
        %573 = vmatpush1.bf16.msra.mxu0 0
        %574 = vmatprep.subr.bf16.mxu0 0
        %575 = vmatpush1.bf16.msra.mxu0 0
        %576 = vmatprep.subr.bf16.mxu0 0
        %577 = vmatpush1.bf16.msra.mxu0 0
        %578 = vmatprep.subr.bf16.mxu0 0
        %579 = vmatpush1.bf16.msra.mxu0 0
        %580 = vmatprep.subr.bf16.mxu0 0
        %581 = vmatpush1.bf16.msra.mxu0 0
        %582 = vmatprep.subr.bf16.mxu0 0
        %583 = vmatpush1.bf16.msra.mxu0 0
        %584 = vmatprep.subr.bf16.mxu0 0
        %585 = vmatpush1.bf16.msra.mxu0 0
        %586 = vmatprep.subr.bf16.mxu0 0
        %587 = vmatpush1.bf16.msra.mxu0 0
        %588 = vmatprep.subr.bf16.mxu0 0
        %589 = vmatpush1.bf16.msra.mxu0 0
        %590 = vmatprep.subr.bf16.mxu0 0
        %591 = vmatpush1.bf16.msra.mxu0 0
        %592 = vmatprep.subr.bf16.mxu0 0
        %593 = vmatpush1.bf16.msra.mxu0 0
        %594 = vmatprep.subr.bf16.mxu0 0
        %595 = vmatpush1.bf16.msra.mxu0 0
        %596 = vmatprep.subr.bf16.mxu0 0
        %597 = vmatpush1.bf16.msra.mxu0 0
        %598 = vmatprep.mubr.bf16.mxu0 0
        %599 = vmatmul.mubr.bf16.gmra.mrb[0].mxu0 %v561
        %v600 = vpop.f32.mrb[0].mxu0
        %v601 = vadd.f32 0.0, %v600
        %v602 = vpop.f32.mrb[0].mxu0
        %v603 = vpop.f32.mrb[0].mxu0
        %v604 = vpop.f32.mrb[0].mxu0
        %605 = vdwg.mxu0
        %v606 = vadd.f32 %v553, %v601
        %v607 = vld [vmem:[%s4] sm:$0xff]
        %609 = vset.pattern.permute.xlu0 0
        %610 = vperm.xlu0 %609, %v607
        %v611 = vpop.permute.xlu0 %610
        %v613 = vadd.f32 %v606, %v611
        %v614 = vld [vmem:[%s5] sm:$0xf]
        %v616 = vsel %vm294, %v614, 0
        %618 = vmatprep.subr.bf16.mxu0 0
        %619 = vmatpush1.bf16.msra.mxu0 %v300
        %620 = vmatprep.subr.bf16.mxu0 0
        %621 = vmatpush1.bf16.msra.mxu0 0
        %622 = vmatprep.subr.bf16.mxu0 0
        %623 = vmatpush1.bf16.msra.mxu0 0
        %624 = vmatprep.subr.bf16.mxu0 0
        %625 = vmatpush1.bf16.msra.mxu0 0
        %626 = vmatprep.subr.bf16.mxu0 0
        %627 = vmatpush1.bf16.msra.mxu0 0
        %628 = vmatprep.subr.bf16.mxu0 0
        %629 = vmatpush1.bf16.msra.mxu0 0
        %630 = vmatprep.subr.bf16.mxu0 0
        %631 = vmatpush1.bf16.msra.mxu0 0
        %632 = vmatprep.subr.bf16.mxu0 0
        %633 = vmatpush1.bf16.msra.mxu0 0
        %634 = vmatprep.subr.bf16.mxu0 0
        %635 = vmatpush1.bf16.msra.mxu0 0
        %636 = vmatprep.subr.bf16.mxu0 0
        %637 = vmatpush1.bf16.msra.mxu0 0
        %638 = vmatprep.subr.bf16.mxu0 0
        %639 = vmatpush1.bf16.msra.mxu0 0
        %640 = vmatprep.subr.bf16.mxu0 0
        %641 = vmatpush1.bf16.msra.mxu0 0
        %642 = vmatprep.subr.bf16.mxu0 0
        %643 = vmatpush1.bf16.msra.mxu0 0
        %644 = vmatprep.subr.bf16.mxu0 0
        %645 = vmatpush1.bf16.msra.mxu0 0
        %646 = vmatprep.subr.bf16.mxu0 0
        %647 = vmatpush1.bf16.msra.mxu0 0
        %648 = vmatprep.subr.bf16.mxu0 0
        %649 = vmatpush1.bf16.msra.mxu0 0
        %650 = vmatprep.mubr.bf16.mxu0 0
        %651 = vmatmul.mubr.bf16.gmra.mrb[0].mxu0 %v616
        %v652 = vpop.f32.mrb[0].mxu0
        %v653 = vadd.f32 0.0, %v652
        %v654 = vpop.f32.mrb[0].mxu0
        %v655 = vpop.f32.mrb[0].mxu0
        %v656 = vpop.f32.mrb[0].mxu0
        %657 = vdwg.mxu0
        %v658 = vadd.f32 %v613, %v653
        %v659 = vmax.f32 %v658, 0.0
        %vm660 = vcmask 130048
        %661 = vst.msk [vmem:[%s257] sm:$0xff] %vm660, %v659
        %s662 = sand.u32 %s160, 1
        %s663 = scalar_lea.sflag [#allocation4], %s662
        %s664 = sand.u32 %s160, 1
        %s665 = smul.addr %s664, 8
        %s666 = scalar_lea.vmem [#allocation5], %s665
        // Predicated region
        $region49: #{tpu_custom_call.1} parent=43 // pred_check
          %p667 = pneg %p170
        $region50: #{tpu_custom_call.1} parent=43 // pred_check_branch
          %669 = sbr.rel (%p667) target = $region52
        $region51: #{tpu_custom_call.1} parent=43 // pred_region
          %s671 = ssub.s32 128, 128
          %672 = vsyncadd %s663, %s671
          %s673 = smul.addr %s21, 128
          %s674 = scalar_lea.hbm %s6, %s673
          %s676 = sshll.u32 %s666, 4
          %s677 = int_to_ptr.vmem [resolvable:$true] %s676
          %679 = dma.vmem_to_hbm [thread:$0]  %s677, 128, %s674, %s663
        $region52: #{tpu_custom_call.1} parent=43 // pred_fallthru
          _
      $region44: #{tpu_custom_call.1} parent=5 // pred_fallthru
        _
      %p680 = scmp.le.s32.totalorder 2, %s16
      // Predicated region
      $region53: #{tpu_custom_call.1} parent=5 // pred_check
        %p681 = pneg %p680
      $region54: #{tpu_custom_call.1} parent=5 // pred_check_branch
        %683 = sbr.rel (%p681) target = $region56
      $region55: #{tpu_custom_call.1} parent=5 // pred_region
        %s684 = ssub.s32 %s16, 2
        // Predicated region
        $region57: #{tpu_custom_call.1} parent=55 // pred_check
          %p685 = pneg %p176
        $region58: #{tpu_custom_call.1} parent=55 // pred_check_branch
          %687 = sbr.rel (%p685) target = $region60
        $region59: #{tpu_custom_call.1} parent=55 // pred_region
          %s688 = sand.u32 %s161, 1
          %s689 = scalar_lea.sflag [#allocation4], %s688
          %s690 = sand.u32 %s161, 1
          %s691 = smul.addr %s690, 8
          %s692 = scalar_lea.vmem [#allocation5], %s691
          %693 = dma.done %s689, 128
        $region60: #{tpu_custom_call.1} parent=55 // pred_fallthru
          _
      $region56: #{tpu_custom_call.1} parent=5 // pred_fallthru
        _
    $region6: #{tpu_custom_call.1} parent=1 // loop_footer
      %s20 = sadd.s32 1, %s16
    $region7: #{tpu_custom_call.1} parent=1 // loop_footer_branch
      %15 = sbr.rel target = $region3
    $region8: #{tpu_custom_call.1} parent=1 // loop_exit
      _
    %694 = vsyncpa [#allocation3], 1
    %s695 = scalar_lea.sflag [#allocation3], 1
    %696 = vsyncpa %s695, 1
    %697 = vsyncpa [#allocation4], 1
    %s698 = scalar_lea.sflag [#allocation4], 1
    %699 = vsyncpa %s698, 1

</llo_original>
